<compile_context>
chip_gen: v7x
topology: tpu7x:2x2x1
jax: 0.10.0
libtpu: 0.0.40
codegen_flags: <defaults>
</compile_context>

<pallas_src>
import jax
import jax.numpy as jnp
from jax.experimental import pallas as pl
from jax.experimental.pallas import tpu as pltpu

NUM_EMBEDDINGS = 50  # nn.Embedding(50, num_pos_feats)


def _pos_embed_kernel(col_t_ref, row_t_ref, s_col_ref, s_row_ref, out_ref):
    """Grid step 0 writes the col-embedding half, step 1 the row-embedding half.

    col_t_ref: (F, W)   = col_embed.weight[:W].T
    row_t_ref: (F, H)   = row_embed.weight[:H].T
    s_col_ref: (W, H*W) one-hot selector,  S_col[w, h*W + w'] = (w == w')
    s_row_ref: (H, H*W) one-hot selector,  S_row[h, h'*W + w] = (h == h')
    out_ref:   (1, F, H*W) — one channel half of the CHW-flat embedding.
    """
    half = pl.program_id(0)

    @pl.when(half == 0)
    def _():
        out_ref[0] = jnp.dot(
            col_t_ref[...], s_col_ref[...],
            preferred_element_type=jnp.float32).astype(out_ref.dtype)

    @pl.when(half == 1)
    def _():
        out_ref[0] = jnp.dot(
            row_t_ref[...], s_row_ref[...],
            preferred_element_type=jnp.float32).astype(out_ref.dtype)


@jax.jit
def position_embedding_learned(x, col_weight, row_weight):
    """x: (B, C, H, W); col_weight/row_weight: (50, F). Returns (B, 2F, H, W)."""
    B = x.shape[0]
    H, W = x.shape[-2], x.shape[-1]
    F = col_weight.shape[-1]
    dtype = col_weight.dtype

    if H > NUM_EMBEDDINGS or W > NUM_EMBEDDINGS:
        raise ValueError(
            f"H={H}, W={W} exceed the embedding table size {NUM_EMBEDDINGS}")

    # Tiny (<= 50 x F) slices/transposes; negligible next to the output slab.
    col_t = jnp.transpose(col_weight[:W, :])                      # (F, W)
    row_t = jnp.transpose(row_weight[:H, :])                      # (F, H)

    # One-hot selector matrices (built from constants -> constant-folded).
    p = jnp.arange(H * W, dtype=jnp.int32)
    s_col = (p[None, :] % W == jnp.arange(W, dtype=jnp.int32)[:, None]).astype(dtype)
    s_row = (p[None, :] // W == jnp.arange(H, dtype=jnp.int32)[:, None]).astype(dtype)

    pos2 = pl.pallas_call(
        _pos_embed_kernel,
        out_shape=jax.ShapeDtypeStruct((2, F, H * W), dtype),
        grid=(2,),
        in_specs=[
            pl.BlockSpec((F, W), lambda c: (0, 0)),
            pl.BlockSpec((F, H), lambda c: (0, 0)),
            pl.BlockSpec((W, H * W), lambda c: (0, 0)),
            pl.BlockSpec((H, H * W), lambda c: (0, 0)),
        ],
        out_specs=pl.BlockSpec((1, F, H * W), lambda c: (c, 0, 0)),
        compiler_params=pltpu.CompilerParams(
            dimension_semantics=("parallel",)),
    )(col_t, row_t, s_col, s_row)

    # Row-major metadata-only reshape: (2, F, H*W) -> (2F, H, W),
    # then a batch broadcast (fused / single HBM materialization by XLA).
    pos = pos2.reshape(2 * F, H, W)
    return jnp.broadcast_to(pos[None], (B, 2 * F, H, W))


def _reference(x, col_weight, row_weight):
    """Pure-JAX reference mirroring the PyTorch forward."""
    B = x.shape[0]
    H, W = x.shape[-2], x.shape[-1]
    x_emb = col_weight[jnp.arange(W)]                             # (W, F)
    y_emb = row_weight[jnp.arange(H)]                             # (H, F)
    pos = jnp.concatenate(
        [
            jnp.broadcast_to(x_emb[None, :, :], (H, W, x_emb.shape[-1])),
            jnp.broadcast_to(y_emb[:, None, :], (H, W, y_emb.shape[-1])),
        ],
        axis=-1,
    )
    pos = jnp.transpose(pos, (2, 0, 1))[None]
    return jnp.broadcast_to(pos, (B,) + pos.shape[1:])


if __name__ == "__main__":
    key = jax.random.PRNGKey(0)
    k_col, k_row, k_x = jax.random.split(key, 3)

    B, C, H, W = 2, 4, 16, 16
    F = 32  # num_pos_feats (small for the demo; real DINO uses 256)

    # nn.init.uniform_ -> U[0, 1)
    col_weight = jax.random.uniform(k_col, (NUM_EMBEDDINGS, F), dtype=jnp.float32)
    row_weight = jax.random.uniform(k_row, (NUM_EMBEDDINGS, F), dtype=jnp.float32)

    x = jax.random.normal(k_x, (B, C, H, W), dtype=jnp.float32)

    pos = position_embedding_learned(x, col_weight, row_weight)
    pos = jax.block_until_ready(pos)

    ref = _reference(x, col_weight, row_weight)
    assert pos.shape == (B, 2 * F, H, W), pos.shape
    assert jnp.allclose(pos, ref, atol=1e-5, rtol=1e-5), "mismatch vs reference"

    print("KERNEL_OK")
</pallas_src>

<mosaic_0001>
module attributes {stable_mosaic.version = 11 : i64} {
  func.func @_pos_embed_kernel(%arg0: i32, %arg1: memref<32x16xf32, #tpu.memory_space<vmem>>, %arg2: memref<32x16xf32, #tpu.memory_space<vmem>>, %arg3: memref<16x256xf32, #tpu.memory_space<vmem>>, %arg4: memref<16x256xf32, #tpu.memory_space<vmem>>, %arg5: memref<1x32x256xf32, #tpu.memory_space<vmem>>) attributes {dimension_semantics = [#tpu.dimension_semantics<parallel>], iteration_bounds = array<i64: 2>, scalar_prefetch = 0 : i64, scratch_operands = 0 : i64, tpu.core_type = #tpu.core_type<tc>, window_params = [{pipeline_mode = #tpu.pipeline_mode<synchronous>, transform_indices = @transform_0, window_bounds = array<i64: 32, 16>}, {pipeline_mode = #tpu.pipeline_mode<synchronous>, transform_indices = @transform_1, window_bounds = array<i64: 32, 16>}, {pipeline_mode = #tpu.pipeline_mode<synchronous>, transform_indices = @transform_2, window_bounds = array<i64: 16, 256>}, {pipeline_mode = #tpu.pipeline_mode<synchronous>, transform_indices = @transform_3, window_bounds = array<i64: 16, 256>}, {transform_indices = @transform_4, window_bounds = array<i64: 1, 32, 256>}]} {
    %c0_i32 = arith.constant 0 : i32
    %0 = arith.cmpi eq, %arg0, %c0_i32 : i32
    %1 = arith.extui %0 : i1 to i32
    %c0_i32_0 = arith.constant 0 : i32
    %2 = arith.cmpi ne, %1, %c0_i32_0 : i32
    scf.if %2 {
      %c0 = arith.constant 0 : index
      %c0_2 = arith.constant 0 : index
      %6 = vector.load %arg1[%c0, %c0_2] : memref<32x16xf32, #tpu.memory_space<vmem>>, vector<32x16xf32>
      %c0_3 = arith.constant 0 : index
      %c0_4 = arith.constant 0 : index
      %7 = vector.load %arg3[%c0_3, %c0_4] : memref<16x256xf32, #tpu.memory_space<vmem>>, vector<16x256xf32>
      %cst = arith.constant dense<0.000000e+00> : vector<32x256xf32>
      %8 = tpu.matmul %6, %7, %cst {dimension_numbers = #tpu.dot_dimension_numbers<[1], [0], [0], [1], [0, 0, 1, 1], [], []>} : vector<32x16xf32>, vector<16x256xf32>, vector<32x256xf32> -> vector<32x256xf32>
      %c0_5 = arith.constant 0 : index
      %c0_6 = arith.constant 0 : index
      %c0_7 = arith.constant 0 : index
      %9 = vector.load %arg5[%c0_5, %c0_6, %c0_7] : memref<1x32x256xf32, #tpu.memory_space<vmem>>, vector<1x32x256xf32>
      %10 = vector.shape_cast %9 : vector<1x32x256xf32> to vector<32x256xf32>
      %11 = vector.shape_cast %8 : vector<32x256xf32> to vector<1x32x256xf32>
      tpu.vector_store %arg5[%c0_5, %c0_6, %c0_7], %11 {strides = array<i32>} : memref<1x32x256xf32, #tpu.memory_space<vmem>>, vector<1x32x256xf32>,
    } else {
    }
    %c1_i32 = arith.constant 1 : i32
    %3 = arith.cmpi eq, %arg0, %c1_i32 : i32
    %4 = arith.extui %3 : i1 to i32
    %c0_i32_1 = arith.constant 0 : i32
    %5 = arith.cmpi ne, %4, %c0_i32_1 : i32
    scf.if %5 {
      %c0 = arith.constant 0 : index
      %c0_2 = arith.constant 0 : index
      %6 = vector.load %arg2[%c0, %c0_2] : memref<32x16xf32, #tpu.memory_space<vmem>>, vector<32x16xf32>
      %c0_3 = arith.constant 0 : index
      %c0_4 = arith.constant 0 : index
      %7 = vector.load %arg4[%c0_3, %c0_4] : memref<16x256xf32, #tpu.memory_space<vmem>>, vector<16x256xf32>
      %cst = arith.constant dense<0.000000e+00> : vector<32x256xf32>
      %8 = tpu.matmul %6, %7, %cst {dimension_numbers = #tpu.dot_dimension_numbers<[1], [0], [0], [1], [0, 0, 1, 1], [], []>} : vector<32x16xf32>, vector<16x256xf32>, vector<32x256xf32> -> vector<32x256xf32>
      %c0_5 = arith.constant 0 : index
      %c0_6 = arith.constant 0 : index
      %c0_7 = arith.constant 0 : index
      %9 = vector.load %arg5[%c0_5, %c0_6, %c0_7] : memref<1x32x256xf32, #tpu.memory_space<vmem>>, vector<1x32x256xf32>
      %10 = vector.shape_cast %9 : vector<1x32x256xf32> to vector<32x256xf32>
      %11 = vector.shape_cast %8 : vector<32x256xf32> to vector<1x32x256xf32>
      tpu.vector_store %arg5[%c0_5, %c0_6, %c0_7], %11 {strides = array<i32>} : memref<1x32x256xf32, #tpu.memory_space<vmem>>, vector<1x32x256xf32>,
    } else {
    }
    return
  }
  func.func @transform_0(%arg0: i32) -> (i32, i32) {
    %c0_i32 = arith.constant 0 : i32
    %c0_i32_0 = arith.constant 0 : i32
    %c0_i32_1 = arith.constant 0 : i32
    return %c0_i32, %c0_i32_0 : i32, i32
  }
  func.func @transform_1(%arg0: i32) -> (i32, i32) {
    %c0_i32 = arith.constant 0 : i32
    %c0_i32_0 = arith.constant 0 : i32
    %c0_i32_1 = arith.constant 0 : i32
    return %c0_i32, %c0_i32_0 : i32, i32
  }
  func.func @transform_2(%arg0: i32) -> (i32, i32) {
    %c0_i32 = arith.constant 0 : i32
    %c0_i32_0 = arith.constant 0 : i32
    %c0_i32_1 = arith.constant 0 : i32
    return %c0_i32, %c0_i32_0 : i32, i32
  }
  func.func @transform_3(%arg0: i32) -> (i32, i32) {
    %c0_i32 = arith.constant 0 : i32
    %c0_i32_0 = arith.constant 0 : i32
    %c0_i32_1 = arith.constant 0 : i32
    return %c0_i32, %c0_i32_0 : i32, i32
  }
  func.func @transform_4(%arg0: i32) -> (i32, i32, i32) {
    %c0_i32 = arith.constant 0 : i32
    %c0_i32_0 = arith.constant 0 : i32
    %c0_i32_1 = arith.constant 0 : i32
    return %arg0, %c0_i32, %c0_i32_0 : i32, i32, i32
  }
}

</mosaic_0001>

<llo_original>
// kernel: position_embedding_learned.1
$region0: #{position_embedding_learned.1}
  #allocation0 [shape = 'u32[]', space=smem, size = 0x4, offset = 0x4, fixed_abs, tag = 'smem constant byte address 0x4 - core index']
  #allocation1 [shape = 'u32[144,128]{1,0:T(1,128)}', space=vmem, size = 0x12000, scoped, tag = 'internal scratch']
  %s0 = inlined_call_operand.vmem [shape: f32[32,16], index: 0, kind: input, shape index: {}]
  %s1 = inlined_call_operand.vmem [shape: f32[32,16], index: 1, kind: input, shape index: {}]
  %s2 = inlined_call_operand.vmem [shape: f32[16,256], index: 2, kind: input, shape index: {}]
  %s3 = inlined_call_operand.vmem [shape: f32[16,256], index: 3, kind: input, shape index: {}]
  %s4 = inlined_call_operand.vmem [shape: f32[2,32,256], index: 4, kind: output, shape index: {}]
  %s5 = sld [smem:[#allocation0]]
  $region57: #{position_embedding_learned.1} parent=0
    _
  %s7 = ssub.s32 1, %s5
  %s8 = scalar_select 0, %s7, %s5
  loop: start=0, step=1, limit=4
  $region2: #{position_embedding_learned.1} parent=0 // loop_pre_header
    _
  $region3: #{position_embedding_learned.1} parent=0 // loop_header
    %s10 = sphi 0, %s14
    %p11 = scmp.ge.s32.totalorder %s10, 4
    %s18 = sphi 0, %s18
    %s20 = sphi 0, %s18
    %s21 = sphi 0, %s20
    %s35 = sphi 0, %s21
    %s39 = sphi 0, %s39
    %s41 = sphi 0, %s39
    %s42 = sphi 0, %s41
    %s56 = sphi 0, %s42
    %s60 = sphi 0, %s60
    %s62 = sphi 0, %s60
    %s63 = sphi 0, %s62
    %s77 = sphi 0, %s63
    %s81 = sphi 0, %s81
    %s83 = sphi 0, %s81
    %s84 = sphi 0, %s83
    %s98 = sphi 0, %s84
    %s104 = sphi 0, %s106
    %s107 = sphi 0, %s104
    %s108 = sphi 0, %s107
    %s124 = sphi 0, %s108
  $region4: #{position_embedding_learned.1} parent=0 // loop_header_branch
    %13 = sbr.rel (%p11) target = $region8
  $region5: #{position_embedding_learned.1} parent=0 // loop_body
    %s15 = ssub.s32 %s10, 1
    %s16 = ssub.s32 %s10, 2
    %s17 = sadd.s32 %s10, 1
    %s19 = sadd.s32 %s18, 1
    %p22 = scmp.eq.s32.totalorder %s10, 1
    %p23 = scmp.ne.s32.totalorder %s18, %s20
    %p24 = scmp.eq.s32.totalorder %s10, 0
    %p25 = por %p23, %p24
    %p26 = scmp.ne.s32.totalorder %s18, %s20
    %p27 = scmp.eq.s32.totalorder %s15, 1
    %p28 = por %p26, %p27
    %p29 = scmp.ne.s32.totalorder %s20, %s21
    %p30 = scmp.eq.s32.totalorder %s15, 0
    %p31 = por %p29, %p30
    %p32 = scmp.ne.s32.totalorder %s20, %s21
    %p33 = scmp.eq.s32.totalorder %s16, 1
    %p34 = por %p32, %p33
    %p36 = scmp.ne.s32.totalorder %s21, %s35
    %p37 = scmp.eq.s32.totalorder %s16, 0
    %p38 = por %p36, %p37
    %s40 = sadd.s32 %s39, 1
    %p43 = scmp.eq.s32.totalorder %s10, 1
    %p44 = scmp.ne.s32.totalorder %s39, %s41
    %p45 = scmp.eq.s32.totalorder %s10, 0
    %p46 = por %p44, %p45
    %p47 = scmp.ne.s32.totalorder %s39, %s41
    %p48 = scmp.eq.s32.totalorder %s15, 1
    %p49 = por %p47, %p48
    %p50 = scmp.ne.s32.totalorder %s41, %s42
    %p51 = scmp.eq.s32.totalorder %s15, 0
    %p52 = por %p50, %p51
    %p53 = scmp.ne.s32.totalorder %s41, %s42
    %p54 = scmp.eq.s32.totalorder %s16, 1
    %p55 = por %p53, %p54
    %p57 = scmp.ne.s32.totalorder %s42, %s56
    %p58 = scmp.eq.s32.totalorder %s16, 0
    %p59 = por %p57, %p58
    %s61 = sadd.s32 %s60, 1
    %p64 = scmp.eq.s32.totalorder %s10, 1
    %p65 = scmp.ne.s32.totalorder %s60, %s62
    %p66 = scmp.eq.s32.totalorder %s10, 0
    %p67 = por %p65, %p66
    %p68 = scmp.ne.s32.totalorder %s60, %s62
    %p69 = scmp.eq.s32.totalorder %s15, 1
    %p70 = por %p68, %p69
    %p71 = scmp.ne.s32.totalorder %s62, %s63
    %p72 = scmp.eq.s32.totalorder %s15, 0
    %p73 = por %p71, %p72
    %p74 = scmp.ne.s32.totalorder %s62, %s63
    %p75 = scmp.eq.s32.totalorder %s16, 1
    %p76 = por %p74, %p75
    %p78 = scmp.ne.s32.totalorder %s63, %s77
    %p79 = scmp.eq.s32.totalorder %s16, 0
    %p80 = por %p78, %p79
    %s82 = sadd.s32 %s81, 1
    %p85 = scmp.eq.s32.totalorder %s10, 1
    %p86 = scmp.ne.s32.totalorder %s81, %s83
    %p87 = scmp.eq.s32.totalorder %s10, 0
    %p88 = por %p86, %p87
    %p89 = scmp.ne.s32.totalorder %s81, %s83
    %p90 = scmp.eq.s32.totalorder %s15, 1
    %p91 = por %p89, %p90
    %p92 = scmp.ne.s32.totalorder %s83, %s84
    %p93 = scmp.eq.s32.totalorder %s15, 0
    %p94 = por %p92, %p93
    %p95 = scmp.ne.s32.totalorder %s83, %s84
    %p96 = scmp.eq.s32.totalorder %s16, 1
    %p97 = por %p95, %p96
    %p99 = scmp.ne.s32.totalorder %s84, %s98
    %p100 = scmp.eq.s32.totalorder %s16, 0
    %p101 = por %p99, %p100
    %s102 = ssub.s32 %s10, %s17
    %p103 = scmp.eq.s32.totalorder %s102, 0
    %s105 = sadd.s32 %s104, 1
    %s106 = scalar_select %p103, %s104, %s105
    %p109 = pneg %p103
    %p110 = scmp.eq.s32.totalorder %s10, 1
    %p111 = por %p109, %p110
    %p112 = scmp.ne.s32.totalorder %s104, %s107
    %p113 = scmp.eq.s32.totalorder %s10, 0
    %p114 = por %p112, %p113
    %p115 = scmp.ne.s32.totalorder %s104, %s107
    %p116 = scmp.eq.s32.totalorder %s15, 1
    %p117 = por %p115, %p116
    %p118 = scmp.ne.s32.totalorder %s107, %s108
    %p119 = scmp.eq.s32.totalorder %s15, 0
    %p120 = por %p118, %p119
    %p121 = scmp.ne.s32.totalorder %s107, %s108
    %p122 = scmp.eq.s32.totalorder %s16, 1
    %p123 = por %p121, %p122
    %p125 = scmp.ne.s32.totalorder %s108, %s124
    %p126 = scmp.eq.s32.totalorder %s16, 0
    %p127 = por %p125, %p126
    %p128 = scmp.le.s32.totalorder 1, %s10
    %p129 = scmp.lt.s32.totalorder %s10, 3
    %p130 = pnand %p128, %p129
    %p131 = pneg %p130
    // Predicated region
    $region9: #{position_embedding_learned.1} parent=5 // pred_check
      _
    $region10: #{position_embedding_learned.1} parent=5 // pred_check_branch
      %133 = sbr.rel (%p130) target = $region12
    $region11: #{position_embedding_learned.1} parent=5 // pred_region
      %s134 = ssub.s32 %s10, 1
      // Predicated region
      $region13: #{position_embedding_learned.1} parent=11 // pred_check
        %p135 = pneg %p31
      $region14: #{position_embedding_learned.1} parent=11 // pred_check_branch
        %137 = sbr.rel (%p135) target = $region16
      $region15: #{position_embedding_learned.1} parent=11 // pred_region
        _
      $region16: #{position_embedding_learned.1} parent=11 // pred_fallthru
        _
      // Predicated region
      $region17: #{position_embedding_learned.1} parent=11 // pred_check
        %p138 = pneg %p52
      $region18: #{position_embedding_learned.1} parent=11 // pred_check_branch
        %140 = sbr.rel (%p138) target = $region20
      $region19: #{position_embedding_learned.1} parent=11 // pred_region
        _
      $region20: #{position_embedding_learned.1} parent=11 // pred_fallthru
        _
      // Predicated region
      $region21: #{position_embedding_learned.1} parent=11 // pred_check
        %p141 = pneg %p73
      $region22: #{position_embedding_learned.1} parent=11 // pred_check_branch
        %143 = sbr.rel (%p141) target = $region24
      $region23: #{position_embedding_learned.1} parent=11 // pred_region
        _
      $region24: #{position_embedding_learned.1} parent=11 // pred_fallthru
        _
      // Predicated region
      $region25: #{position_embedding_learned.1} parent=11 // pred_check
        %p144 = pneg %p94
      $region26: #{position_embedding_learned.1} parent=11 // pred_check_branch
        %146 = sbr.rel (%p144) target = $region28
      $region27: #{position_embedding_learned.1} parent=11 // pred_region
        _
      $region28: #{position_embedding_learned.1} parent=11 // pred_fallthru
        _
    $region12: #{position_embedding_learned.1} parent=5 // pred_fallthru
      _
    %p147 = scmp.lt.s32.totalorder %s10, 2
    // Predicated region
    $region29: #{position_embedding_learned.1} parent=5 // pred_check
      %p148 = pneg %p147
    $region30: #{position_embedding_learned.1} parent=5 // pred_check_branch
      %150 = sbr.rel (%p148) target = $region32
    $region31: #{position_embedding_learned.1} parent=5 // pred_region
      _
    $region32: #{position_embedding_learned.1} parent=5 // pred_fallthru
      _
    %p151 = scmp.le.s32.totalorder 1, %s10
    %p152 = scmp.lt.s32.totalorder %s10, 3
    %p153 = pnand %p151, %p152
    %p154 = pneg %p153
    // Predicated region
    $region33: #{position_embedding_learned.1} parent=5 // pred_check
      _
    $region34: #{position_embedding_learned.1} parent=5 // pred_check_branch
      %156 = sbr.rel (%p153) target = $region36
    $region35: #{position_embedding_learned.1} parent=5 // pred_region
      %s157 = ssub.s32 %s10, 1
      %p158 = pneg %p31
      %p159 = pneg %p28
      %p160 = pneg %p52
      %p161 = pneg %p49
      %p162 = pneg %p73
      %p163 = pneg %p70
      %p164 = pneg %p94
      %p165 = pneg %p91
      %p166 = pneg %p120
      %p167 = pneg %p117
      %p168 = scmp.lt.s32.totalorder %s15, 1
      %s169 = scalar_select %p168, %s15, 1
      %s170 = smul.addr %s169, 8
      %s171 = smul.addr %s170, 8
      %s172 = scalar_lea.vmem %s4, %s171
      %p173 = scmp.lt.s32.totalorder %s15, 1
      %s174 = scalar_select %p173, %s15, 1
      %s175 = smul.addr %s174, 8
      %s176 = smul.addr %s175, 8
      %s177 = scalar_lea.vmem %s4, %s176
      %p178 = scmp.eq.s32.totalorder %s15, 0
      // Predicated region
      $region37: #{position_embedding_learned.1} parent=35 // pred_check
        %p179 = pneg %p178
      $region38: #{position_embedding_learned.1} parent=35 // pred_check_branch
        %181 = sbr.rel (%p179) target = $region40
      $region39: #{position_embedding_learned.1} parent=35 // pred_region
        %v182 = vld [vmem:[%s0] sm:$0xff]
        %v183 = vld [vmem:[%s0 + $0x8] sm:$0xff]
        %v184 = vld [vmem:[%s0 + $0x10] sm:$0xff]
        %v185 = vld [vmem:[%s0 + $0x18] sm:$0xff]
        %v186 = vld [vmem:[%s2] sm:$0xff]
        %v187 = vld [vmem:[%s2 + $0x8] sm:$0xff]
        %v188 = vld [vmem:[%s2 + $0x10] sm:$0xff]
        %v189 = vld [vmem:[%s2 + $0x18] sm:$0xff]
        %vm190 = vcmask 130048
        %v192 = vsel %vm190, %v182, 0
        %v195 = vsel %vm190, %v183, 0
        %v198 = vsel %vm190, %v184, 0
        %v201 = vsel %vm190, %v185, 0
        %203 = vmatprep.subr.mxu0 %v187
        %204 = vmatpush1.msra.mxu0 %v186
        %205 = vmatprep.subr.mxu0 %v189
        %206 = vmatpush1.msra.mxu0 %v188
        %207 = vmatprep.subr.mxu0 0.0
        %208 = vmatpush1.msra.mxu0 0.0
        %209 = vmatprep.subr.mxu0 0.0
        %210 = vmatpush1.msra.mxu0 0.0
        %211 = vmatprep.subr.mxu0 0.0
        %212 = vmatpush1.msra.mxu0 0.0
        %213 = vmatprep.subr.mxu0 0.0
        %214 = vmatpush1.msra.mxu0 0.0
        %215 = vmatprep.subr.mxu0 0.0
        %216 = vmatpush1.msra.mxu0 0.0
        %217 = vmatprep.subr.mxu0 0.0
        %218 = vmatpush1.msra.mxu0 0.0
        %219 = vmatprep.subr.mxu0 0.0
        %220 = vmatpush1.msra.mxu0 0.0
        %221 = vmatprep.subr.mxu0 0.0
        %222 = vmatpush1.msra.mxu0 0.0
        %223 = vmatprep.subr.mxu0 0.0
        %224 = vmatpush1.msra.mxu0 0.0
        %225 = vmatprep.subr.mxu0 0.0
        %226 = vmatpush1.msra.mxu0 0.0
        %227 = vmatprep.subr.mxu0 0.0
        %228 = vmatpush1.msra.mxu0 0.0
        %229 = vmatprep.subr.mxu0 0.0
        %230 = vmatpush1.msra.mxu0 0.0
        %231 = vmatprep.subr.mxu0 0.0
        %232 = vmatpush1.msra.mxu0 0.0
        %233 = vmatprep.subr.mxu0 0.0
        %234 = vmatpush1.msra.mxu0 0.0
        %235 = vmatprep.subr.mxu0 0.0
        %236 = vmatpush1.msra.mxu0 0.0
        %237 = vmatprep.subr.mxu0 0.0
        %238 = vmatpush1.msra.mxu0 0.0
        %239 = vmatprep.subr.mxu0 0.0
        %240 = vmatpush1.msra.mxu0 0.0
        %241 = vmatprep.subr.mxu0 0.0
        %242 = vmatpush1.msra.mxu0 0.0
        %243 = vmatprep.subr.mxu0 0.0
        %244 = vmatpush1.msra.mxu0 0.0
        %245 = vmatprep.subr.mxu0 0.0
        %246 = vmatpush1.msra.mxu0 0.0
        %247 = vmatprep.subr.mxu0 0.0
        %248 = vmatpush1.msra.mxu0 0.0
        %249 = vmatprep.subr.mxu0 0.0
        %250 = vmatpush1.msra.mxu0 0.0
        %251 = vmatprep.subr.mxu0 0.0
        %252 = vmatpush1.msra.mxu0 0.0
        %253 = vmatprep.subr.mxu0 0.0
        %254 = vmatpush1.msra.mxu0 0.0
        %255 = vmatprep.subr.mxu0 0.0
        %256 = vmatpush1.msra.mxu0 0.0
        %257 = vmatprep.subr.mxu0 0.0
        %258 = vmatpush1.msra.mxu0 0.0
        %259 = vmatprep.subr.mxu0 0.0
        %260 = vmatpush1.msra.mxu0 0.0
        %261 = vmatprep.subr.mxu0 0.0
        %262 = vmatpush1.msra.mxu0 0.0
        %263 = vmatprep.subr.mxu0 0.0
        %264 = vmatpush1.msra.mxu0 0.0
        %265 = vmatprep.subr.mxu0 0.0
        %266 = vmatpush1.msra.mxu0 0.0
        %267 = vmatprep.mubr.f32.mxu0 0.0
        %268 = vmatmul.mubr.f32.gmra.mrb[0].mxu0 %v192
        %v269 = vpop.f32.mrb[0].mxu0
        %v270 = vadd.f32 0.0, %v269
        %v271 = vpop.f32.mrb[0].mxu0
        %v272 = vadd.f32 0.0, %v271
        %273 = vmatprep.mubr.f32.mxu0 0.0
        %274 = vmatmul.mubr.f32.gmra.mrb[0].mxu0 %v195
        %v275 = vpop.f32.mrb[0].mxu0
        %v276 = vadd.f32 0.0, %v275
        %v277 = vpop.f32.mrb[0].mxu0
        %v278 = vadd.f32 0.0, %v277
        %279 = vmatprep.mubr.f32.mxu0 0.0
        %280 = vmatmul.mubr.f32.gmra.mrb[0].mxu0 %v198
        %v281 = vpop.f32.mrb[0].mxu0
        %v282 = vadd.f32 0.0, %v281
        %v283 = vpop.f32.mrb[0].mxu0
        %v284 = vadd.f32 0.0, %v283
        %285 = vmatprep.mubr.f32.mxu0 0.0
        %286 = vmatmul.mubr.f32.gmra.mrb[0].mxu0 %v201
        %v287 = vpop.f32.mrb[0].mxu0
        %v288 = vadd.f32 0.0, %v287
        %v289 = vpop.f32.mrb[0].mxu0
        %v290 = vadd.f32 0.0, %v289
        %291 = vdwg.mxu0
        %292 = vst [vmem:[%s177] sm:$0xff] %v270
        %293 = vst [vmem:[%s177 + $0x8] sm:$0xff] %v272
        %294 = vst [vmem:[%s177 + $0x10] sm:$0xff] %v276
        %295 = vst [vmem:[%s177 + $0x18] sm:$0xff] %v278
        %296 = vst [vmem:[%s177 + $0x20] sm:$0xff] %v282
        %297 = vst [vmem:[%s177 + $0x28] sm:$0xff] %v284
        %298 = vst [vmem:[%s177 + $0x30] sm:$0xff] %v288
        %299 = vst [vmem:[%s177 + $0x38] sm:$0xff] %v290
      $region40: #{position_embedding_learned.1} parent=35 // pred_fallthru
        _
      %p300 = scmp.eq.s32.totalorder %s15, 1
      // Predicated region
      $region41: #{position_embedding_learned.1} parent=35 // pred_check
        %p301 = pneg %p300
      $region42: #{position_embedding_learned.1} parent=35 // pred_check_branch
        %303 = sbr.rel (%p301) target = $region44
      $region43: #{position_embedding_learned.1} parent=35 // pred_region
        %v304 = vld [vmem:[%s1] sm:$0xff]
        %v305 = vld [vmem:[%s1 + $0x8] sm:$0xff]
        %v306 = vld [vmem:[%s1 + $0x10] sm:$0xff]
        %v307 = vld [vmem:[%s1 + $0x18] sm:$0xff]
        %v308 = vld [vmem:[%s3] sm:$0xff]
        %v309 = vld [vmem:[%s3 + $0x8] sm:$0xff]
        %v310 = vld [vmem:[%s3 + $0x10] sm:$0xff]
        %v311 = vld [vmem:[%s3 + $0x18] sm:$0xff]
        %vm312 = vcmask 130048
        %v314 = vsel %vm312, %v304, 0
        %v317 = vsel %vm312, %v305, 0
        %v320 = vsel %vm312, %v306, 0
        %v323 = vsel %vm312, %v307, 0
        %325 = vmatprep.subr.mxu0 %v309
        %326 = vmatpush1.msra.mxu0 %v308
        %327 = vmatprep.subr.mxu0 %v311
        %328 = vmatpush1.msra.mxu0 %v310
        %329 = vmatprep.subr.mxu0 0.0
        %330 = vmatpush1.msra.mxu0 0.0
        %331 = vmatprep.subr.mxu0 0.0
        %332 = vmatpush1.msra.mxu0 0.0
        %333 = vmatprep.subr.mxu0 0.0
        %334 = vmatpush1.msra.mxu0 0.0
        %335 = vmatprep.subr.mxu0 0.0
        %336 = vmatpush1.msra.mxu0 0.0
        %337 = vmatprep.subr.mxu0 0.0
        %338 = vmatpush1.msra.mxu0 0.0
        %339 = vmatprep.subr.mxu0 0.0
        %340 = vmatpush1.msra.mxu0 0.0
        %341 = vmatprep.subr.mxu0 0.0
        %342 = vmatpush1.msra.mxu0 0.0
        %343 = vmatprep.subr.mxu0 0.0
        %344 = vmatpush1.msra.mxu0 0.0
        %345 = vmatprep.subr.mxu0 0.0
        %346 = vmatpush1.msra.mxu0 0.0
        %347 = vmatprep.subr.mxu0 0.0
        %348 = vmatpush1.msra.mxu0 0.0
        %349 = vmatprep.subr.mxu0 0.0
        %350 = vmatpush1.msra.mxu0 0.0
        %351 = vmatprep.subr.mxu0 0.0
        %352 = vmatpush1.msra.mxu0 0.0
        %353 = vmatprep.subr.mxu0 0.0
        %354 = vmatpush1.msra.mxu0 0.0
        %355 = vmatprep.subr.mxu0 0.0
        %356 = vmatpush1.msra.mxu0 0.0
        %357 = vmatprep.subr.mxu0 0.0
        %358 = vmatpush1.msra.mxu0 0.0
        %359 = vmatprep.subr.mxu0 0.0
        %360 = vmatpush1.msra.mxu0 0.0
        %361 = vmatprep.subr.mxu0 0.0
        %362 = vmatpush1.msra.mxu0 0.0
        %363 = vmatprep.subr.mxu0 0.0
        %364 = vmatpush1.msra.mxu0 0.0
        %365 = vmatprep.subr.mxu0 0.0
        %366 = vmatpush1.msra.mxu0 0.0
        %367 = vmatprep.subr.mxu0 0.0
        %368 = vmatpush1.msra.mxu0 0.0
        %369 = vmatprep.subr.mxu0 0.0
        %370 = vmatpush1.msra.mxu0 0.0
        %371 = vmatprep.subr.mxu0 0.0
        %372 = vmatpush1.msra.mxu0 0.0
        %373 = vmatprep.subr.mxu0 0.0
        %374 = vmatpush1.msra.mxu0 0.0
        %375 = vmatprep.subr.mxu0 0.0
        %376 = vmatpush1.msra.mxu0 0.0
        %377 = vmatprep.subr.mxu0 0.0
        %378 = vmatpush1.msra.mxu0 0.0
        %379 = vmatprep.subr.mxu0 0.0
        %380 = vmatpush1.msra.mxu0 0.0
        %381 = vmatprep.subr.mxu0 0.0
        %382 = vmatpush1.msra.mxu0 0.0
        %383 = vmatprep.subr.mxu0 0.0
        %384 = vmatpush1.msra.mxu0 0.0
        %385 = vmatprep.subr.mxu0 0.0
        %386 = vmatpush1.msra.mxu0 0.0
        %387 = vmatprep.subr.mxu0 0.0
        %388 = vmatpush1.msra.mxu0 0.0
        %389 = vmatprep.mubr.f32.mxu0 0.0
        %390 = vmatmul.mubr.f32.gmra.mrb[0].mxu0 %v314
        %v391 = vpop.f32.mrb[0].mxu0
        %v392 = vadd.f32 0.0, %v391
        %v393 = vpop.f32.mrb[0].mxu0
        %v394 = vadd.f32 0.0, %v393
        %395 = vmatprep.mubr.f32.mxu0 0.0
        %396 = vmatmul.mubr.f32.gmra.mrb[0].mxu0 %v317
        %v397 = vpop.f32.mrb[0].mxu0
        %v398 = vadd.f32 0.0, %v397
        %v399 = vpop.f32.mrb[0].mxu0
        %v400 = vadd.f32 0.0, %v399
        %401 = vmatprep.mubr.f32.mxu0 0.0
        %402 = vmatmul.mubr.f32.gmra.mrb[0].mxu0 %v320
        %v403 = vpop.f32.mrb[0].mxu0
        %v404 = vadd.f32 0.0, %v403
        %v405 = vpop.f32.mrb[0].mxu0
        %v406 = vadd.f32 0.0, %v405
        %407 = vmatprep.mubr.f32.mxu0 0.0
        %408 = vmatmul.mubr.f32.gmra.mrb[0].mxu0 %v323
        %v409 = vpop.f32.mrb[0].mxu0
        %v410 = vadd.f32 0.0, %v409
        %v411 = vpop.f32.mrb[0].mxu0
        %v412 = vadd.f32 0.0, %v411
        %413 = vdwg.mxu0
        %414 = vst [vmem:[%s177] sm:$0xff] %v392
        %415 = vst [vmem:[%s177 + $0x8] sm:$0xff] %v394
        %416 = vst [vmem:[%s177 + $0x10] sm:$0xff] %v398
        %417 = vst [vmem:[%s177 + $0x18] sm:$0xff] %v400
        %418 = vst [vmem:[%s177 + $0x20] sm:$0xff] %v404
        %419 = vst [vmem:[%s177 + $0x28] sm:$0xff] %v406
        %420 = vst [vmem:[%s177 + $0x30] sm:$0xff] %v410
        %421 = vst [vmem:[%s177 + $0x38] sm:$0xff] %v412
      $region44: #{position_embedding_learned.1} parent=35 // pred_fallthru
        _
      %p422 = scmp.lt.s32.totalorder %s15, 1
      %s423 = scalar_select %p422, %s15, 1
      %s424 = smul.addr %s423, 8
      %s425 = smul.addr %s424, 8
      %s426 = scalar_lea.vmem %s4, %s425
      // Predicated region
      $region45: #{position_embedding_learned.1} parent=35 // pred_check
        %p427 = pneg %p117
      $region46: #{position_embedding_learned.1} parent=35 // pred_check_branch
        %429 = sbr.rel (%p427) target = $region48
      $region47: #{position_embedding_learned.1} parent=35 // pred_region
        _
      $region48: #{position_embedding_learned.1} parent=35 // pred_fallthru
        _
    $region36: #{position_embedding_learned.1} parent=5 // pred_fallthru
      _
    %p430 = scmp.le.s32.totalorder 2, %s10
    // Predicated region
    $region49: #{position_embedding_learned.1} parent=5 // pred_check
      %p431 = pneg %p430
    $region50: #{position_embedding_learned.1} parent=5 // pred_check_branch
      %433 = sbr.rel (%p431) target = $region52
    $region51: #{position_embedding_learned.1} parent=5 // pred_region
      %s434 = ssub.s32 %s10, 2
      // Predicated region
      $region53: #{position_embedding_learned.1} parent=51 // pred_check
        %p435 = pneg %p123
      $region54: #{position_embedding_learned.1} parent=51 // pred_check_branch
        %437 = sbr.rel (%p435) target = $region56
      $region55: #{position_embedding_learned.1} parent=51 // pred_region
        %p438 = scmp.lt.s32.totalorder %s16, 1
        %s439 = scalar_select %p438, %s16, 1
        %s440 = smul.addr %s439, 8
        %s441 = smul.addr %s440, 8
        %s442 = scalar_lea.vmem %s4, %s441
      $region56: #{position_embedding_learned.1} parent=51 // pred_fallthru
        _
    $region52: #{position_embedding_learned.1} parent=5 // pred_fallthru
      _
  $region6: #{position_embedding_learned.1} parent=0 // loop_footer
    %s14 = sadd.s32 1, %s10
  $region7: #{position_embedding_learned.1} parent=0 // loop_footer_branch
    %9 = sbr.rel target = $region3
  $region8: #{position_embedding_learned.1} parent=0 // loop_exit
    _

</llo_original>
